<compile_context>
chip_gen: v7x
topology: tpu7x:2x2x1
jax: 0.10.0
libtpu: 0.0.40
codegen_flags: <defaults>
</compile_context>

<pallas_src>
import functools

import jax
import jax.numpy as jnp
from jax.experimental import pallas as pl
from jax.experimental.pallas import tpu as pltpu

ACTION_MIN = -1.0
ACTION_MAX = 1.0
STD_MIN = 0.01
STD_MAX = 1.0 * (ACTION_MAX - ACTION_MIN)  # 2.0


def _round_up(x, m):
    return ((x + m - 1) // m) * m


# ---------------------------------------------------------------------------
# Kernels (feature-major: activations are [features, batch_tile])
# ---------------------------------------------------------------------------
def _mlp_head(x_ref, w0_ref, b0_ref, w1_ref, b1_ref, w2_ref, b2_ref, use_bf16):
    """MLP in transposed layout: y = W2 @ relu(W1 @ relu(W0 @ x + b0) + b1) + b2."""
    def mm(w, h):
        if use_bf16:
            w = w.astype(jnp.bfloat16)
            h = h.astype(jnp.bfloat16)
        return jnp.dot(w, h, preferred_element_type=jnp.float32)

    h = jnp.maximum(mm(w0_ref[...], x_ref[...]) + b0_ref[...], 0.0)
    h = jnp.maximum(mm(w1_ref[...], h) + b1_ref[...], 0.0)
    return mm(w2_ref[...], h) + b2_ref[...]


def _det_kernel(x_ref, w0_ref, b0_ref, w1_ref, b1_ref, w2_ref, b2_ref,
                out_ref, *, use_bf16):
    # torch.clamp(self.mean(state), -1, 1)
    m = _mlp_head(x_ref, w0_ref, b0_ref, w1_ref, b1_ref, w2_ref, b2_ref, use_bf16)
    out_ref[...] = jnp.clip(m, ACTION_MIN, ACTION_MAX)


def _sample_kernel(x_ref, w0_ref, b0_ref, w1_ref, b1_ref, w2_ref, b2_ref,
                   std_ref, eps_ref, out_ref, *, use_bf16):
    # clipped_action policy head; std is precomputed (batch-independent).
    m = _mlp_head(x_ref, w0_ref, b0_ref, w1_ref, b1_ref, w2_ref, b2_ref, use_bf16)
    mean = ACTION_MIN + (ACTION_MAX - ACTION_MIN) * jax.nn.sigmoid(m)
    sample = mean + std_ref[...] * eps_ref[...]          # reparameterized Normal sample
    out_ref[...] = jnp.clip(sample, ACTION_MIN, ACTION_MAX)


# ---------------------------------------------------------------------------
# Wrapper
# ---------------------------------------------------------------------------
def clipped_gaussian_policy_forward(state, params, eps=None, deterministic=False,
                                    *, block_batch=1024, use_bf16=False):
    """state: [B, obs] f32; params: torch-layout weights (w: [out, in], b: [out, 1],
    log_std: [act]); eps: [B, act] standard-normal draws (unused/None if deterministic)."""
    state = jnp.asarray(state, jnp.float32)
    B, obs_dim = state.shape
    act_dim = params["w2"].shape[0]

    # Batch tile: multiple of 128 (batch sits on the lane axis).
    tb = _round_up(min(block_batch, B), 128)
    b_pad = _round_up(B, tb)
    grid = (b_pad // tb,)

    # Feature-major, lane-dense input slab: [obs, B_pad].
    x_t = jnp.pad(state.T, ((0, 0), (0, b_pad - B)))

    def resident_spec(arr):                      # weights/biases: VMEM-resident
        return pl.BlockSpec(arr.shape, lambda i: (0, 0))

    def batch_spec(rows):                        # tiled along the batch (lane) axis
        return pl.BlockSpec((rows, tb), lambda i: (0, i))

    w0, b0 = params["w0"], params["b0"]
    w1, b1 = params["w1"], params["b1"]
    w2, b2 = params["w2"], params["b2"]

    inputs = [x_t, w0, b0, w1, b1, w2, b2]
    in_specs = [batch_spec(obs_dim),
                resident_spec(w0), resident_spec(b0),
                resident_spec(w1), resident_spec(b1),
                resident_spec(w2), resident_spec(b2)]

    if deterministic:
        kernel = functools.partial(_det_kernel, use_bf16=use_bf16)
    else:
        assert eps is not None, "stochastic forward needs standard-normal eps"
        # Hoisted, batch-independent std of the clipped-Gaussian head.
        log_std = jnp.asarray(params["log_std"], jnp.float32).reshape(act_dim, 1)
        min_log_std = jnp.log(jnp.float32(STD_MIN))
        max_log_std = jnp.log(jnp.float32(STD_MAX))
        std = jnp.exp(min_log_std
                      + (max_log_std - min_log_std) * jax.nn.sigmoid(log_std))
        eps_t = jnp.pad(jnp.asarray(eps, jnp.float32).T, ((0, 0), (0, b_pad - B)))
        inputs += [std, eps_t]
        in_specs += [resident_spec(std), batch_spec(act_dim)]
        kernel = functools.partial(_sample_kernel, use_bf16=use_bf16)

    out_t = pl.pallas_call(
        kernel,
        out_shape=jax.ShapeDtypeStruct((act_dim, b_pad), jnp.float32),
        grid=grid,
        in_specs=in_specs,
        out_specs=batch_spec(act_dim),
        compiler_params=pltpu.CompilerParams(
            dimension_semantics=("parallel",),
            vmem_limit_bytes=32 * 1024 * 1024,
        ),
    )(*inputs)

    return out_t[:, :B].T                         # back to [B, act]


# ---------------------------------------------------------------------------
# Pure-JAX reference & synthetic init
# ---------------------------------------------------------------------------
def _reference_forward(state, params, eps, deterministic=False, use_bf16=False):
    def mm(x, w):
        if use_bf16:
            x = x.astype(jnp.bfloat16)
            w = w.astype(jnp.bfloat16)
        return jnp.dot(x, w.T, preferred_element_type=jnp.float32)

    h = jnp.maximum(mm(state, params["w0"]) + params["b0"].T, 0.0)
    h = jnp.maximum(mm(h, params["w1"]) + params["b1"].T, 0.0)
    m = mm(h, params["w2"]) + params["b2"].T
    if deterministic:
        return jnp.clip(m, ACTION_MIN, ACTION_MAX)
    mean = ACTION_MIN + (ACTION_MAX - ACTION_MIN) * jax.nn.sigmoid(m)
    std = jnp.exp(jnp.log(STD_MIN)
                  + (jnp.log(STD_MAX) - jnp.log(STD_MIN)) * jax.nn.sigmoid(params["log_std"]))
    return jnp.clip(mean + std[None, :] * eps, ACTION_MIN, ACTION_MAX)


def _init_params(key, architecture):
    """Deterministic synthetic init; torch-style layout (w: [out,in], b: [out,1]),
    log_std initialized to 0 as in GaussianPolicy.__init__."""
    params = {}
    for i, (din, dout) in enumerate(zip(architecture[:-1], architecture[1:])):
        key, wk, bk = jax.random.split(key, 3)
        scale = 1.0 / jnp.sqrt(jnp.float32(din))
        params[f"w{i}"] = jax.random.uniform(wk, (dout, din), jnp.float32, -1.0, 1.0) * scale
        params[f"b{i}"] = jax.random.uniform(bk, (dout, 1), jnp.float32, -1.0, 1.0) * scale
    params["log_std"] = jnp.zeros((architecture[-1],), jnp.float32)
    return params


if __name__ == "__main__":
    key = jax.random.PRNGKey(0)
    ARCHITECTURE = [16, 32, 32, 8]   # [obs_dim, hidden, hidden, act_dim]
    B = 300                           # not a multiple of 128: exercises padding + 3-step grid

    key, pkey, skey, ekey = jax.random.split(key, 4)
    params = _init_params(pkey, ARCHITECTURE)
    state = jax.random.normal(skey, (B, ARCHITECTURE[0]), jnp.float32)
    eps = jax.random.normal(ekey, (B, ARCHITECTURE[-1]), jnp.float32)

    # Stochastic path (policy.sample() with externally drawn eps, then clamp).
    out_sample = clipped_gaussian_policy_forward(
        state, params, eps, deterministic=False, block_batch=128)
    # Deterministic path (clamp(mean(state), -1, 1)); eps not shipped at all.
    out_det = clipped_gaussian_policy_forward(
        state, params, None, deterministic=True, block_batch=128)
    # bf16-MXU variant (v6e/v7x fast path).
    out_sample_bf16 = clipped_gaussian_policy_forward(
        state, params, eps, deterministic=False, block_batch=128, use_bf16=True)
    jax.block_until_ready((out_sample, out_det, out_sample_bf16))

    ref_sample = _reference_forward(state, params, eps, deterministic=False)
    ref_det = _reference_forward(state, params, None, deterministic=True)
    ref_sample_bf16 = _reference_forward(state, params, eps, deterministic=False,
                                         use_bf16=True)

    assert out_sample.shape == (B, ARCHITECTURE[-1])
    assert out_det.shape == (B, ARCHITECTURE[-1])
    assert jnp.allclose(out_sample, ref_sample, atol=1e-4, rtol=1e-4)
    assert jnp.allclose(out_det, ref_det, atol=1e-4, rtol=1e-4)
    assert jnp.allclose(out_sample_bf16, ref_sample_bf16, atol=2e-2, rtol=0)

    print("KERNEL_OK")
</pallas_src>

<mosaic_0001>
module attributes {stable_mosaic.version = 11 : i64} {
  func.func @_sample_kernel(%arg0: i32, %arg1: memref<16x128xf32, #tpu.memory_space<vmem>>, %arg2: memref<32x16xf32, #tpu.memory_space<vmem>>, %arg3: memref<32x1xf32, #tpu.memory_space<vmem>>, %arg4: memref<32x32xf32, #tpu.memory_space<vmem>>, %arg5: memref<32x1xf32, #tpu.memory_space<vmem>>, %arg6: memref<8x32xf32, #tpu.memory_space<vmem>>, %arg7: memref<8x1xf32, #tpu.memory_space<vmem>>, %arg8: memref<8x1xf32, #tpu.memory_space<vmem>>, %arg9: memref<8x128xf32, #tpu.memory_space<vmem>>, %arg10: memref<8x128xf32, #tpu.memory_space<vmem>>) attributes {dimension_semantics = [#tpu.dimension_semantics<parallel>], iteration_bounds = array<i64: 3>, scalar_prefetch = 0 : i64, scratch_operands = 0 : i64, tpu.core_type = #tpu.core_type<tc>, window_params = [{transform_indices = @transform_0, window_bounds = array<i64: 16, 128>}, {pipeline_mode = #tpu.pipeline_mode<synchronous>, transform_indices = @transform_1, window_bounds = array<i64: 32, 16>}, {pipeline_mode = #tpu.pipeline_mode<synchronous>, transform_indices = @transform_2, window_bounds = array<i64: 32, 1>}, {pipeline_mode = #tpu.pipeline_mode<synchronous>, transform_indices = @transform_3, window_bounds = array<i64: 32, 32>}, {pipeline_mode = #tpu.pipeline_mode<synchronous>, transform_indices = @transform_4, window_bounds = array<i64: 32, 1>}, {pipeline_mode = #tpu.pipeline_mode<synchronous>, transform_indices = @transform_5, window_bounds = array<i64: 8, 32>}, {pipeline_mode = #tpu.pipeline_mode<synchronous>, transform_indices = @transform_6, window_bounds = array<i64: 8, 1>}, {pipeline_mode = #tpu.pipeline_mode<synchronous>, transform_indices = @transform_7, window_bounds = array<i64: 8, 1>}, {transform_indices = @transform_8, window_bounds = array<i64: 8, 128>}, {transform_indices = @transform_9, window_bounds = array<i64: 8, 128>}]} {
    %c0 = arith.constant 0 : index
    %c0_0 = arith.constant 0 : index
    %0 = vector.load %arg2[%c0, %c0_0] : memref<32x16xf32, #tpu.memory_space<vmem>>, vector<32x16xf32>
    %c0_1 = arith.constant 0 : index
    %c0_2 = arith.constant 0 : index
    %1 = vector.load %arg1[%c0_1, %c0_2] : memref<16x128xf32, #tpu.memory_space<vmem>>, vector<16x128xf32>
    %cst = arith.constant dense<0.000000e+00> : vector<32x128xf32>
    %2 = tpu.matmul %0, %1, %cst {dimension_numbers = #tpu.dot_dimension_numbers<[1], [0], [0], [1], [0, 0, 1, 1], [], []>} : vector<32x16xf32>, vector<16x128xf32>, vector<32x128xf32> -> vector<32x128xf32>
    %c0_3 = arith.constant 0 : index
    %c0_4 = arith.constant 0 : index
    %3 = vector.load %arg3[%c0_3, %c0_4] : memref<32x1xf32, #tpu.memory_space<vmem>>, vector<32x1xf32>
    %4 = vector.broadcast %3 : vector<32x1xf32> to vector<32x128xf32>
    %5 = arith.addf %2, %4 : vector<32x128xf32>
    %cst_5 = arith.constant 0.000000e+00 : f32
    %6 = vector.broadcast %cst_5 : f32 to vector<32x128xf32>
    %7 = arith.maximumf %5, %6 : vector<32x128xf32>
    %c0_6 = arith.constant 0 : index
    %c0_7 = arith.constant 0 : index
    %8 = vector.load %arg4[%c0_6, %c0_7] : memref<32x32xf32, #tpu.memory_space<vmem>>, vector<32x32xf32>
    %cst_8 = arith.constant dense<0.000000e+00> : vector<32x128xf32>
    %9 = tpu.matmul %8, %7, %cst_8 {dimension_numbers = #tpu.dot_dimension_numbers<[1], [0], [0], [1], [0, 0, 1, 1], [], []>} : vector<32x32xf32>, vector<32x128xf32>, vector<32x128xf32> -> vector<32x128xf32>
    %c0_9 = arith.constant 0 : index
    %c0_10 = arith.constant 0 : index
    %10 = vector.load %arg5[%c0_9, %c0_10] : memref<32x1xf32, #tpu.memory_space<vmem>>, vector<32x1xf32>
    %11 = vector.broadcast %10 : vector<32x1xf32> to vector<32x128xf32>
    %12 = arith.addf %9, %11 : vector<32x128xf32>
    %cst_11 = arith.constant 0.000000e+00 : f32
    %13 = vector.broadcast %cst_11 : f32 to vector<32x128xf32>
    %14 = arith.maximumf %12, %13 : vector<32x128xf32>
    %c0_12 = arith.constant 0 : index
    %c0_13 = arith.constant 0 : index
    %15 = vector.load %arg6[%c0_12, %c0_13] : memref<8x32xf32, #tpu.memory_space<vmem>>, vector<8x32xf32>
    %cst_14 = arith.constant dense<0.000000e+00> : vector<8x128xf32>
    %16 = tpu.matmul %15, %14, %cst_14 {dimension_numbers = #tpu.dot_dimension_numbers<[1], [0], [0], [1], [0, 0, 1, 1], [], []>} : vector<8x32xf32>, vector<32x128xf32>, vector<8x128xf32> -> vector<8x128xf32>
    %c0_15 = arith.constant 0 : index
    %c0_16 = arith.constant 0 : index
    %17 = vector.load %arg7[%c0_15, %c0_16] : memref<8x1xf32, #tpu.memory_space<vmem>>, vector<8x1xf32>
    %18 = vector.broadcast %17 : vector<8x1xf32> to vector<8x128xf32>
    %19 = arith.addf %16, %18 : vector<8x128xf32>
    %20 = arith.negf %19 : vector<8x128xf32>
    %21 = math.exp %20 : vector<8x128xf32>
    %cst_17 = arith.constant 1.000000e+00 : f32
    %22 = vector.broadcast %cst_17 : f32 to vector<8x128xf32>
    %23 = arith.addf %22, %21 : vector<8x128xf32>
    %24 = arith.divf %22, %23 : vector<8x128xf32>
    %cst_18 = arith.constant 2.000000e+00 : f32
    %25 = vector.broadcast %cst_18 : f32 to vector<8x128xf32>
    %26 = arith.mulf %25, %24 : vector<8x128xf32>
    %cst_19 = arith.constant -1.000000e+00 : f32
    %27 = vector.broadcast %cst_19 : f32 to vector<8x128xf32>
    %28 = arith.addf %27, %26 : vector<8x128xf32>
    %c0_20 = arith.constant 0 : index
    %c0_21 = arith.constant 0 : index
    %29 = vector.load %arg8[%c0_20, %c0_21] : memref<8x1xf32, #tpu.memory_space<vmem>>, vector<8x1xf32>
    %c0_22 = arith.constant 0 : index
    %c0_23 = arith.constant 0 : index
    %30 = vector.load %arg9[%c0_22, %c0_23] : memref<8x128xf32, #tpu.memory_space<vmem>>, vector<8x128xf32>
    %31 = vector.broadcast %29 : vector<8x1xf32> to vector<8x128xf32>
    %32 = arith.mulf %31, %30 : vector<8x128xf32>
    %33 = arith.addf %28, %32 : vector<8x128xf32>
    %cst_24 = arith.constant -1.000000e+00 : f32
    %cst_25 = arith.constant 1.000000e+00 : f32
    %34 = vector.broadcast %cst_24 : f32 to vector<8x128xf32>
    %35 = arith.maximumf %34, %33 : vector<8x128xf32>
    %36 = vector.broadcast %cst_25 : f32 to vector<8x128xf32>
    %37 = arith.minimumf %36, %35 : vector<8x128xf32>
    %c0_26 = arith.constant 0 : index
    %c0_27 = arith.constant 0 : index
    %38 = vector.load %arg10[%c0_26, %c0_27] : memref<8x128xf32, #tpu.memory_space<vmem>>, vector<8x128xf32>
    tpu.vector_store %arg10[%c0_26, %c0_27], %37 {strides = array<i32>} : memref<8x128xf32, #tpu.memory_space<vmem>>, vector<8x128xf32>,
    return
  }
  func.func @transform_0(%arg0: i32) -> (i32, i32) {
    %c0_i32 = arith.constant 0 : i32
    %c0_i32_0 = arith.constant 0 : i32
    return %c0_i32, %arg0 : i32, i32
  }
  func.func @transform_1(%arg0: i32) -> (i32, i32) {
    %c0_i32 = arith.constant 0 : i32
    %c0_i32_0 = arith.constant 0 : i32
    %c0_i32_1 = arith.constant 0 : i32
    return %c0_i32, %c0_i32_0 : i32, i32
  }
  func.func @transform_2(%arg0: i32) -> (i32, i32) {
    %c0_i32 = arith.constant 0 : i32
    %c0_i32_0 = arith.constant 0 : i32
    %c0_i32_1 = arith.constant 0 : i32
    return %c0_i32, %c0_i32_0 : i32, i32
  }
  func.func @transform_3(%arg0: i32) -> (i32, i32) {
    %c0_i32 = arith.constant 0 : i32
    %c0_i32_0 = arith.constant 0 : i32
    %c0_i32_1 = arith.constant 0 : i32
    return %c0_i32, %c0_i32_0 : i32, i32
  }
  func.func @transform_4(%arg0: i32) -> (i32, i32) {
    %c0_i32 = arith.constant 0 : i32
    %c0_i32_0 = arith.constant 0 : i32
    %c0_i32_1 = arith.constant 0 : i32
    return %c0_i32, %c0_i32_0 : i32, i32
  }
  func.func @transform_5(%arg0: i32) -> (i32, i32) {
    %c0_i32 = arith.constant 0 : i32
    %c0_i32_0 = arith.constant 0 : i32
    %c0_i32_1 = arith.constant 0 : i32
    return %c0_i32, %c0_i32_0 : i32, i32
  }
  func.func @transform_6(%arg0: i32) -> (i32, i32) {
    %c0_i32 = arith.constant 0 : i32
    %c0_i32_0 = arith.constant 0 : i32
    %c0_i32_1 = arith.constant 0 : i32
    return %c0_i32, %c0_i32_0 : i32, i32
  }
  func.func @transform_7(%arg0: i32) -> (i32, i32) {
    %c0_i32 = arith.constant 0 : i32
    %c0_i32_0 = arith.constant 0 : i32
    %c0_i32_1 = arith.constant 0 : i32
    return %c0_i32, %c0_i32_0 : i32, i32
  }
  func.func @transform_8(%arg0: i32) -> (i32, i32) {
    %c0_i32 = arith.constant 0 : i32
    %c0_i32_0 = arith.constant 0 : i32
    return %c0_i32, %arg0 : i32, i32
  }
  func.func @transform_9(%arg0: i32) -> (i32, i32) {
    %c0_i32 = arith.constant 0 : i32
    %c0_i32_0 = arith.constant 0 : i32
    return %c0_i32, %arg0 : i32, i32
  }
}

</mosaic_0001>

<llo_original>
// kernel: tpu_custom_call.1
$region0: #{tpu_custom_call.1}
  #allocation0 [shape = 'u32[]', space=smem, size = 0x4, offset = 0x4, fixed_abs, tag = 'smem constant byte address 0x4 - core index']
  #allocation1 [shape = 'u32[144,128]{1,0:T(1,128)}', space=vmem, size = 0x12000, scoped, tag = 'internal scratch']
  %s0 = inlined_call_operand.vmem [shape: f32[16,384], index: 0, kind: input, shape index: {}]
  %s1 = inlined_call_operand.vmem [shape: f32[32,16], index: 1, kind: input, shape index: {}]
  %s2 = inlined_call_operand.vmem [shape: f32[32,1], index: 2, kind: input, shape index: {}]
  %s3 = inlined_call_operand.vmem [shape: f32[32,32], index: 3, kind: input, shape index: {}]
  %s4 = inlined_call_operand.vmem [shape: f32[32,1], index: 4, kind: input, shape index: {}]
  %s5 = inlined_call_operand.vmem [shape: f32[8,32], index: 5, kind: input, shape index: {}]
  %s6 = inlined_call_operand.vmem [shape: f32[8,1], index: 6, kind: input, shape index: {}]
  %s7 = inlined_call_operand.vmem [shape: f32[8,1], index: 7, kind: input, shape index: {}]
  %s8 = inlined_call_operand.vmem [shape: f32[8,384], index: 8, kind: input, shape index: {}]
  %s9 = inlined_call_operand.hbm [shape: f32[8,384], index: 9, kind: output, shape index: {}]
  %s10 = sld [smem:[#allocation0]]
  $region107: #{tpu_custom_call.1} parent=0
    _
  %s12 = ssub.s32 1, %s10
  %s13 = scalar_select 0, %s12, %s10
  $region1: #{tpu_custom_call.1} parent=0
    #allocation2 [shape = 'u8[16384]{0}', space=vmem, size = 0x4000, scoped, tag = 'input window, operand 0']
    #allocation3 [shape = 'u8[8192]{0}', space=vmem, size = 0x2000, scoped, tag = 'output window, operand 0']
    #allocation4 [shape = 's32[2]{0}', space=sflag, size = 0x8, scoped, tag = 'scoped memory for tpu_custom_call.1']
    %14 = vsyncpa [#allocation4], 0
    %s15 = scalar_lea.sflag [#allocation4], 1
    %16 = vsyncpa %s15, 0
    loop: start=0, step=1, limit=5
    $region2: #{tpu_custom_call.1} parent=1 // loop_pre_header
      _
    $region3: #{tpu_custom_call.1} parent=1 // loop_header
      %s18 = sphi 0, %s22
      %p19 = scmp.ge.s32.totalorder %s18, 5
      %s28 = sphi 0, %s30
      %s31 = sphi 0, %s28
      %s32 = sphi 0, %s31
      %s48 = sphi 0, %s32
      %s52 = sphi 0, %s52
      %s54 = sphi 0, %s52
      %s55 = sphi 0, %s54
      %s69 = sphi 0, %s55
      %s73 = sphi 0, %s73
      %s75 = sphi 0, %s73
      %s76 = sphi 0, %s75
      %s90 = sphi 0, %s76
      %s94 = sphi 0, %s94
      %s96 = sphi 0, %s94
      %s97 = sphi 0, %s96
      %s111 = sphi 0, %s97
      %s115 = sphi 0, %s115
      %s117 = sphi 0, %s115
      %s118 = sphi 0, %s117
      %s132 = sphi 0, %s118
      %s136 = sphi 0, %s136
      %s138 = sphi 0, %s136
      %s139 = sphi 0, %s138
      %s153 = sphi 0, %s139
      %s157 = sphi 0, %s157
      %s159 = sphi 0, %s157
      %s160 = sphi 0, %s159
      %s174 = sphi 0, %s160
      %s178 = sphi 0, %s178
      %s180 = sphi 0, %s178
      %s181 = sphi 0, %s180
      %s195 = sphi 0, %s181
      %s201 = sphi 0, %s203
      %s204 = sphi 0, %s201
      %s205 = sphi 0, %s204
      %s221 = sphi 0, %s205
      %s227 = sphi 0, %s229
      %s230 = sphi 0, %s227
      %s231 = sphi 0, %s230
      %s247 = sphi 0, %s231
    $region4: #{tpu_custom_call.1} parent=1 // loop_header_branch
      %21 = sbr.rel (%p19) target = $region8
    $region5: #{tpu_custom_call.1} parent=1 // loop_body
      %s23 = ssub.s32 %s18, 1
      %s24 = ssub.s32 %s18, 2
      %s25 = sadd.s32 %s18, 1
      %s26 = ssub.s32 %s18, %s25
      %p27 = scmp.eq.s32.totalorder %s26, 0
      %s29 = sadd.s32 %s28, 1
      %s30 = scalar_select %p27, %s28, %s29
      %p33 = pneg %p27
      %p34 = scmp.eq.s32.totalorder %s18, 2
      %p35 = por %p33, %p34
      %p36 = scmp.ne.s32.totalorder %s28, %s31
      %p37 = scmp.eq.s32.totalorder %s18, 0
      %p38 = por %p36, %p37
      %p39 = scmp.ne.s32.totalorder %s28, %s31
      %p40 = scmp.eq.s32.totalorder %s23, 2
      %p41 = por %p39, %p40
      %p42 = scmp.ne.s32.totalorder %s31, %s32
      %p43 = scmp.eq.s32.totalorder %s23, 0
      %p44 = por %p42, %p43
      %p45 = scmp.ne.s32.totalorder %s31, %s32
      %p46 = scmp.eq.s32.totalorder %s24, 2
      %p47 = por %p45, %p46
      %p49 = scmp.ne.s32.totalorder %s32, %s48
      %p50 = scmp.eq.s32.totalorder %s24, 0
      %p51 = por %p49, %p50
      %s53 = sadd.s32 %s52, 1
      %p56 = scmp.eq.s32.totalorder %s18, 2
      %p57 = scmp.ne.s32.totalorder %s52, %s54
      %p58 = scmp.eq.s32.totalorder %s18, 0
      %p59 = por %p57, %p58
      %p60 = scmp.ne.s32.totalorder %s52, %s54
      %p61 = scmp.eq.s32.totalorder %s23, 2
      %p62 = por %p60, %p61
      %p63 = scmp.ne.s32.totalorder %s54, %s55
      %p64 = scmp.eq.s32.totalorder %s23, 0
      %p65 = por %p63, %p64
      %p66 = scmp.ne.s32.totalorder %s54, %s55
      %p67 = scmp.eq.s32.totalorder %s24, 2
      %p68 = por %p66, %p67
      %p70 = scmp.ne.s32.totalorder %s55, %s69
      %p71 = scmp.eq.s32.totalorder %s24, 0
      %p72 = por %p70, %p71
      %s74 = sadd.s32 %s73, 1
      %p77 = scmp.eq.s32.totalorder %s18, 2
      %p78 = scmp.ne.s32.totalorder %s73, %s75
      %p79 = scmp.eq.s32.totalorder %s18, 0
      %p80 = por %p78, %p79
      %p81 = scmp.ne.s32.totalorder %s73, %s75
      %p82 = scmp.eq.s32.totalorder %s23, 2
      %p83 = por %p81, %p82
      %p84 = scmp.ne.s32.totalorder %s75, %s76
      %p85 = scmp.eq.s32.totalorder %s23, 0
      %p86 = por %p84, %p85
      %p87 = scmp.ne.s32.totalorder %s75, %s76
      %p88 = scmp.eq.s32.totalorder %s24, 2
      %p89 = por %p87, %p88
      %p91 = scmp.ne.s32.totalorder %s76, %s90
      %p92 = scmp.eq.s32.totalorder %s24, 0
      %p93 = por %p91, %p92
      %s95 = sadd.s32 %s94, 1
      %p98 = scmp.eq.s32.totalorder %s18, 2
      %p99 = scmp.ne.s32.totalorder %s94, %s96
      %p100 = scmp.eq.s32.totalorder %s18, 0
      %p101 = por %p99, %p100
      %p102 = scmp.ne.s32.totalorder %s94, %s96
      %p103 = scmp.eq.s32.totalorder %s23, 2
      %p104 = por %p102, %p103
      %p105 = scmp.ne.s32.totalorder %s96, %s97
      %p106 = scmp.eq.s32.totalorder %s23, 0
      %p107 = por %p105, %p106
      %p108 = scmp.ne.s32.totalorder %s96, %s97
      %p109 = scmp.eq.s32.totalorder %s24, 2
      %p110 = por %p108, %p109
      %p112 = scmp.ne.s32.totalorder %s97, %s111
      %p113 = scmp.eq.s32.totalorder %s24, 0
      %p114 = por %p112, %p113
      %s116 = sadd.s32 %s115, 1
      %p119 = scmp.eq.s32.totalorder %s18, 2
      %p120 = scmp.ne.s32.totalorder %s115, %s117
      %p121 = scmp.eq.s32.totalorder %s18, 0
      %p122 = por %p120, %p121
      %p123 = scmp.ne.s32.totalorder %s115, %s117
      %p124 = scmp.eq.s32.totalorder %s23, 2
      %p125 = por %p123, %p124
      %p126 = scmp.ne.s32.totalorder %s117, %s118
      %p127 = scmp.eq.s32.totalorder %s23, 0
      %p128 = por %p126, %p127
      %p129 = scmp.ne.s32.totalorder %s117, %s118
      %p130 = scmp.eq.s32.totalorder %s24, 2
      %p131 = por %p129, %p130
      %p133 = scmp.ne.s32.totalorder %s118, %s132
      %p134 = scmp.eq.s32.totalorder %s24, 0
      %p135 = por %p133, %p134
      %s137 = sadd.s32 %s136, 1
      %p140 = scmp.eq.s32.totalorder %s18, 2
      %p141 = scmp.ne.s32.totalorder %s136, %s138
      %p142 = scmp.eq.s32.totalorder %s18, 0
      %p143 = por %p141, %p142
      %p144 = scmp.ne.s32.totalorder %s136, %s138
      %p145 = scmp.eq.s32.totalorder %s23, 2
      %p146 = por %p144, %p145
      %p147 = scmp.ne.s32.totalorder %s138, %s139
      %p148 = scmp.eq.s32.totalorder %s23, 0
      %p149 = por %p147, %p148
      %p150 = scmp.ne.s32.totalorder %s138, %s139
      %p151 = scmp.eq.s32.totalorder %s24, 2
      %p152 = por %p150, %p151
      %p154 = scmp.ne.s32.totalorder %s139, %s153
      %p155 = scmp.eq.s32.totalorder %s24, 0
      %p156 = por %p154, %p155
      %s158 = sadd.s32 %s157, 1
      %p161 = scmp.eq.s32.totalorder %s18, 2
      %p162 = scmp.ne.s32.totalorder %s157, %s159
      %p163 = scmp.eq.s32.totalorder %s18, 0
      %p164 = por %p162, %p163
      %p165 = scmp.ne.s32.totalorder %s157, %s159
      %p166 = scmp.eq.s32.totalorder %s23, 2
      %p167 = por %p165, %p166
      %p168 = scmp.ne.s32.totalorder %s159, %s160
      %p169 = scmp.eq.s32.totalorder %s23, 0
      %p170 = por %p168, %p169
      %p171 = scmp.ne.s32.totalorder %s159, %s160
      %p172 = scmp.eq.s32.totalorder %s24, 2
      %p173 = por %p171, %p172
      %p175 = scmp.ne.s32.totalorder %s160, %s174
      %p176 = scmp.eq.s32.totalorder %s24, 0
      %p177 = por %p175, %p176
      %s179 = sadd.s32 %s178, 1
      %p182 = scmp.eq.s32.totalorder %s18, 2
      %p183 = scmp.ne.s32.totalorder %s178, %s180
      %p184 = scmp.eq.s32.totalorder %s18, 0
      %p185 = por %p183, %p184
      %p186 = scmp.ne.s32.totalorder %s178, %s180
      %p187 = scmp.eq.s32.totalorder %s23, 2
      %p188 = por %p186, %p187
      %p189 = scmp.ne.s32.totalorder %s180, %s181
      %p190 = scmp.eq.s32.totalorder %s23, 0
      %p191 = por %p189, %p190
      %p192 = scmp.ne.s32.totalorder %s180, %s181
      %p193 = scmp.eq.s32.totalorder %s24, 2
      %p194 = por %p192, %p193
      %p196 = scmp.ne.s32.totalorder %s181, %s195
      %p197 = scmp.eq.s32.totalorder %s24, 0
      %p198 = por %p196, %p197
      %s199 = ssub.s32 %s18, %s25
      %p200 = scmp.eq.s32.totalorder %s199, 0
      %s202 = sadd.s32 %s201, 1
      %s203 = scalar_select %p200, %s201, %s202
      %p206 = pneg %p200
      %p207 = scmp.eq.s32.totalorder %s18, 2
      %p208 = por %p206, %p207
      %p209 = scmp.ne.s32.totalorder %s201, %s204
      %p210 = scmp.eq.s32.totalorder %s18, 0
      %p211 = por %p209, %p210
      %p212 = scmp.ne.s32.totalorder %s201, %s204
      %p213 = scmp.eq.s32.totalorder %s23, 2
      %p214 = por %p212, %p213
      %p215 = scmp.ne.s32.totalorder %s204, %s205
      %p216 = scmp.eq.s32.totalorder %s23, 0
      %p217 = por %p215, %p216
      %p218 = scmp.ne.s32.totalorder %s204, %s205
      %p219 = scmp.eq.s32.totalorder %s24, 2
      %p220 = por %p218, %p219
      %p222 = scmp.ne.s32.totalorder %s205, %s221
      %p223 = scmp.eq.s32.totalorder %s24, 0
      %p224 = por %p222, %p223
      %s225 = ssub.s32 %s18, %s25
      %p226 = scmp.eq.s32.totalorder %s225, 0
      %s228 = sadd.s32 %s227, 1
      %s229 = scalar_select %p226, %s227, %s228
      %p232 = pneg %p226
      %p233 = scmp.eq.s32.totalorder %s18, 2
      %p234 = por %p232, %p233
      %p235 = scmp.ne.s32.totalorder %s227, %s230
      %p236 = scmp.eq.s32.totalorder %s18, 0
      %p237 = por %p235, %p236
      %p238 = scmp.ne.s32.totalorder %s227, %s230
      %p239 = scmp.eq.s32.totalorder %s23, 2
      %p240 = por %p238, %p239
      %p241 = scmp.ne.s32.totalorder %s230, %s231
      %p242 = scmp.eq.s32.totalorder %s23, 0
      %p243 = por %p241, %p242
      %p244 = scmp.ne.s32.totalorder %s230, %s231
      %p245 = scmp.eq.s32.totalorder %s24, 2
      %p246 = por %p244, %p245
      %p248 = scmp.ne.s32.totalorder %s231, %s247
      %p249 = scmp.eq.s32.totalorder %s24, 0
      %p250 = por %p248, %p249
      %p251 = scmp.le.s32.totalorder 1, %s18
      %p252 = scmp.lt.s32.totalorder %s18, 4
      %p253 = pnand %p251, %p252
      %p254 = pneg %p253
      // Predicated region
      $region9: #{tpu_custom_call.1} parent=5 // pred_check
        _
      $region10: #{tpu_custom_call.1} parent=5 // pred_check_branch
        %256 = sbr.rel (%p253) target = $region12
      $region11: #{tpu_custom_call.1} parent=5 // pred_region
        %s257 = ssub.s32 %s18, 1
        // Predicated region
        $region13: #{tpu_custom_call.1} parent=11 // pred_check
          %p258 = pneg %p65
        $region14: #{tpu_custom_call.1} parent=11 // pred_check_branch
          %260 = sbr.rel (%p258) target = $region16
        $region15: #{tpu_custom_call.1} parent=11 // pred_region
          _
        $region16: #{tpu_custom_call.1} parent=11 // pred_fallthru
          _
        // Predicated region
        $region17: #{tpu_custom_call.1} parent=11 // pred_check
          %p261 = pneg %p86
        $region18: #{tpu_custom_call.1} parent=11 // pred_check_branch
          %263 = sbr.rel (%p261) target = $region20
        $region19: #{tpu_custom_call.1} parent=11 // pred_region
          _
        $region20: #{tpu_custom_call.1} parent=11 // pred_fallthru
          _
        // Predicated region
        $region21: #{tpu_custom_call.1} parent=11 // pred_check
          %p264 = pneg %p107
        $region22: #{tpu_custom_call.1} parent=11 // pred_check_branch
          %266 = sbr.rel (%p264) target = $region24
        $region23: #{tpu_custom_call.1} parent=11 // pred_region
          _
        $region24: #{tpu_custom_call.1} parent=11 // pred_fallthru
          _
        // Predicated region
        $region25: #{tpu_custom_call.1} parent=11 // pred_check
          %p267 = pneg %p128
        $region26: #{tpu_custom_call.1} parent=11 // pred_check_branch
          %269 = sbr.rel (%p267) target = $region28
        $region27: #{tpu_custom_call.1} parent=11 // pred_region
          _
        $region28: #{tpu_custom_call.1} parent=11 // pred_fallthru
          _
        // Predicated region
        $region29: #{tpu_custom_call.1} parent=11 // pred_check
          %p270 = pneg %p149
        $region30: #{tpu_custom_call.1} parent=11 // pred_check_branch
          %272 = sbr.rel (%p270) target = $region32
        $region31: #{tpu_custom_call.1} parent=11 // pred_region
          _
        $region32: #{tpu_custom_call.1} parent=11 // pred_fallthru
          _
        // Predicated region
        $region33: #{tpu_custom_call.1} parent=11 // pred_check
          %p273 = pneg %p170
        $region34: #{tpu_custom_call.1} parent=11 // pred_check_branch
          %275 = sbr.rel (%p273) target = $region36
        $region35: #{tpu_custom_call.1} parent=11 // pred_region
          _
        $region36: #{tpu_custom_call.1} parent=11 // pred_fallthru
          _
        // Predicated region
        $region37: #{tpu_custom_call.1} parent=11 // pred_check
          %p276 = pneg %p191
        $region38: #{tpu_custom_call.1} parent=11 // pred_check_branch
          %278 = sbr.rel (%p276) target = $region40
        $region39: #{tpu_custom_call.1} parent=11 // pred_region
          _
        $region40: #{tpu_custom_call.1} parent=11 // pred_fallthru
          _
      $region12: #{tpu_custom_call.1} parent=5 // pred_fallthru
        _
      %p279 = scmp.lt.s32.totalorder %s18, 3
      // Predicated region
      $region41: #{tpu_custom_call.1} parent=5 // pred_check
        %p280 = pneg %p279
      $region42: #{tpu_custom_call.1} parent=5 // pred_check_branch
        %282 = sbr.rel (%p280) target = $region44
      $region43: #{tpu_custom_call.1} parent=5 // pred_region
        // Predicated region
        $region45: #{tpu_custom_call.1} parent=43 // pred_check
          %p283 = pneg %p38
        $region46: #{tpu_custom_call.1} parent=43 // pred_check_branch
          %285 = sbr.rel (%p283) target = $region48
        $region47: #{tpu_custom_call.1} parent=43 // pred_region
          %s286 = sand.u32 %s28, 1
          %s287 = sand.u32 %s28, 1
          %s288 = smul.addr %s287, 16
          %s289 = scalar_lea.vmem [#allocation2], %s288
          %s290 = smul.addr %s18, 8
          %s291 = scalar_lea.vmem %s0, %s290
          // Predicated region
          $region49: #{tpu_custom_call.1} parent=47 // pred_check
            _
          $region50: #{tpu_custom_call.1} parent=47 // pred_check_branch
            %293 = sbr.rel (0) target = $region52
          $region51: #{tpu_custom_call.1} parent=47 // pred_region
            // Predicated region
            $region53: #{tpu_custom_call.1} parent=51 // pred_check
              _
            $region54: #{tpu_custom_call.1} parent=51 // pred_check_branch
              %295 = sbr.rel (0) target = $region56
            $region55: #{tpu_custom_call.1} parent=51 // pred_region
              // Predicated region
              $region68: #{tpu_custom_call.1} parent=55 // pred_check
                _
              $region69: #{tpu_custom_call.1} parent=55 // pred_check_branch
                %312 = sbr.rel (0) target = $region71
              $region70: #{tpu_custom_call.1} parent=55 // pred_region
                loop: start=0, step=1, limit=1
                $region72: #{tpu_custom_call.1} parent=70 // loop_pre_header
                  _
                $region73: #{tpu_custom_call.1} parent=70 // loop_header
                  %s314 = sphi 0, %s318
                  %p315 = scmp.ge.s32.totalorder %s314, 1
                  %s319 = sphi %s291, %s291
                  %s320 = sphi %s289, %s289
                $region74: #{tpu_custom_call.1} parent=70 // loop_header_branch
                  %317 = sbr.rel (%p315) target = $region78
                $region75: #{tpu_custom_call.1} parent=70 // loop_body
                  %v321 = vld [vmem:[%s319] sm:$0xff]
                  %322 = vst [vmem:[%s320] sm:$0xff] %v321
                  %v323 = vld [vmem:[%s319 + $0x18] sm:$0xff]
                  %324 = vst [vmem:[%s320 + $0x8] sm:$0xff] %v323
                $region76: #{tpu_custom_call.1} parent=70 // loop_footer
                  %s318 = sadd.s32 1, %s314
                $region77: #{tpu_custom_call.1} parent=70 // loop_footer_branch
                  %313 = sbr.rel target = $region73
                $region78: #{tpu_custom_call.1} parent=70 // loop_exit
                  _
              $region71: #{tpu_custom_call.1} parent=55 // pred_fallthru
                _
              // Predicated region
              $region79: #{tpu_custom_call.1} parent=55 // pred_check
                _
              $region80: #{tpu_custom_call.1} parent=55 // pred_check_branch
                %326 = sbr.rel target = $region82
              $region81: #{tpu_custom_call.1} parent=55 // pred_region
                _
              $region82: #{tpu_custom_call.1} parent=55 // pred_fallthru
                _
            $region56: #{tpu_custom_call.1} parent=51 // pred_fallthru
              _
            // Predicated region
            $region57: #{tpu_custom_call.1} parent=51 // pred_check
              _
            $region58: #{tpu_custom_call.1} parent=51 // pred_check_branch
              %297 = sbr.rel target = $region60
            $region59: #{tpu_custom_call.1} parent=51 // pred_region
              loop: start=0, step=1, limit=1
              $region61: #{tpu_custom_call.1} parent=59 // loop_pre_header
                _
              $region62: #{tpu_custom_call.1} parent=59 // loop_header
                %s300 = sphi 0, %s304
                %p301 = scmp.ge.s32.totalorder %s300, 1
                %s305 = sphi %s291, %s291
                %s306 = sphi %s289, %s289
              $region63: #{tpu_custom_call.1} parent=59 // loop_header_branch
                %303 = sbr.rel (%p301) target = $region67
              $region64: #{tpu_custom_call.1} parent=59 // loop_body
                %v307 = vld [vmem:[%s305] sm:$0xff]
                %308 = vst [vmem:[%s306] sm:$0xff] %v307
                %v309 = vld [vmem:[%s305 + $0x18] sm:$0xff]
                %310 = vst [vmem:[%s306 + $0x8] sm:$0xff] %v309
              $region65: #{tpu_custom_call.1} parent=59 // loop_footer
                %s304 = sadd.s32 1, %s300
              $region66: #{tpu_custom_call.1} parent=59 // loop_footer_branch
                %299 = sbr.rel target = $region62
              $region67: #{tpu_custom_call.1} parent=59 // loop_exit
                _
            $region60: #{tpu_custom_call.1} parent=51 // pred_fallthru
              _
          $region52: #{tpu_custom_call.1} parent=47 // pred_fallthru
            _
          %327 = vnop
        $region48: #{tpu_custom_call.1} parent=43 // pred_fallthru
          _
        // Predicated region
        $region83: #{tpu_custom_call.1} parent=43 // pred_check
          %p328 = pneg %p211
        $region84: #{tpu_custom_call.1} parent=43 // pred_check_branch
          %330 = sbr.rel (%p328) target = $region86
        $region85: #{tpu_custom_call.1} parent=43 // pred_region
          %p331 = scmp.lt.s32.totalorder %s18, 2
          %s332 = scalar_select %p331, %s18, 2
          %s333 = smul.addr %s332, 8
          %s334 = scalar_lea.vmem %s8, %s333
        $region86: #{tpu_custom_call.1} parent=43 // pred_fallthru
          _
      $region44: #{tpu_custom_call.1} parent=5 // pred_fallthru
        _
      %p335 = scmp.le.s32.totalorder 1, %s18
      %p336 = scmp.lt.s32.totalorder %s18, 4
      %p337 = pnand %p335, %p336
      %p338 = pneg %p337
      // Predicated region
      $region87: #{tpu_custom_call.1} parent=5 // pred_check
        _
      $region88: #{tpu_custom_call.1} parent=5 // pred_check_branch
        %340 = sbr.rel (%p337) target = $region90
      $region89: #{tpu_custom_call.1} parent=5 // pred_region
        %s341 = ssub.s32 %s18, 1
        %s342 = sand.u32 %s31, 1
        %s343 = sand.u32 %s31, 1
        %s344 = smul.addr %s343, 16
        %s345 = scalar_lea.vmem [#allocation2], %s344
        // Predicated region
        $region91: #{tpu_custom_call.1} parent=89 // pred_check
          %p346 = pneg %p44
        $region92: #{tpu_custom_call.1} parent=89 // pred_check_branch
          %348 = sbr.rel (%p346) target = $region94
        $region93: #{tpu_custom_call.1} parent=89 // pred_region
          _
        $region94: #{tpu_custom_call.1} parent=89 // pred_fallthru
          _
        %s349 = sand.u32 %s31, 1
        %s350 = sand.u32 %s31, 1
        %s351 = smul.addr %s350, 16
        %s352 = scalar_lea.vmem [#allocation2], %s351
        %p353 = pneg %p44
        %p354 = pneg %p41
        %p355 = pneg %p65
        %p356 = pneg %p62
        %p357 = pneg %p86
        %p358 = pneg %p83
        %p359 = pneg %p107
        %p360 = pneg %p104
        %p361 = pneg %p128
        %p362 = pneg %p125
        %p363 = pneg %p149
        %p364 = pneg %p146
        %p365 = pneg %p170
        %p366 = pneg %p167
        %p367 = pneg %p191
        %p368 = pneg %p188
        %p369 = scmp.lt.s32.totalorder %s23, 2
        %s370 = scalar_select %p369, %s23, 2
        %s371 = smul.addr %s370, 8
        %s372 = scalar_lea.vmem %s8, %s371
        %p373 = pneg %p217
        %p374 = pneg %p214
        %p375 = pneg %p243
        %p376 = pneg %p240
        %s377 = sand.u32 %s230, 1
        %s378 = scalar_lea.sflag [#allocation4], %s377
        %s379 = sand.u32 %s230, 1
        %s380 = smul.addr %s379, 8
        %s381 = scalar_lea.vmem [#allocation3], %s380
        %p382 = scmp.lt.s32.totalorder %s23, 2
        %s383 = scalar_select %p382, %s23, 2
        %s384 = smul.addr %s383, 8
        %s385 = scalar_lea.vmem %s8, %s384
        %v386 = vld [vmem:[%s1] sm:$0xff]
        %v387 = vld [vmem:[%s1 + $0x8] sm:$0xff]
        %v388 = vld [vmem:[%s1 + $0x10] sm:$0xff]
        %v389 = vld [vmem:[%s1 + $0x18] sm:$0xff]
        %v390 = vld [vmem:[%s345] sm:$0xff]
        %v391 = vld [vmem:[%s345 + $0x8] sm:$0xff]
        %v392 = vld [vmem:[%s2] sm:$0xff]
        %v393 = vld [vmem:[%s2 + $0x8] sm:$0xff]
        %v394 = vld [vmem:[%s2 + $0x10] sm:$0xff]
        %v395 = vld [vmem:[%s2 + $0x18] sm:$0xff]
        %397 = vset.pattern.permute.xlu0 0
        %398 = vperm.xlu0 %397, %v392
        %v399 = vpop.permute.xlu0 %398
        %402 = vset.pattern.permute.xlu0 0
        %403 = vperm.xlu0 %402, %v393
        %v404 = vpop.permute.xlu0 %403
        %407 = vset.pattern.permute.xlu0 0
        %408 = vperm.xlu0 %407, %v394
        %v409 = vpop.permute.xlu0 %408
        %412 = vset.pattern.permute.xlu0 0
        %413 = vperm.xlu0 %412, %v395
        %v414 = vpop.permute.xlu0 %413
        %vm416 = vcmask 130048
        %v418 = vsel %vm416, %v386, 0
        %v421 = vsel %vm416, %v387, 0
        %v424 = vsel %vm416, %v388, 0
        %v427 = vsel %vm416, %v389, 0
        %429 = vmatprep.subr.mxu0 0.0
        %430 = vmatpush1.msra.mxu0 %v390
        %431 = vmatprep.subr.mxu0 0.0
        %432 = vmatpush1.msra.mxu0 %v391
        %433 = vmatprep.subr.mxu0 0.0
        %434 = vmatpush1.msra.mxu0 0.0
        %435 = vmatprep.subr.mxu0 0.0
        %436 = vmatpush1.msra.mxu0 0.0
        %437 = vmatprep.subr.mxu0 0.0
        %438 = vmatpush1.msra.mxu0 0.0
        %439 = vmatprep.subr.mxu0 0.0
        %440 = vmatpush1.msra.mxu0 0.0
        %441 = vmatprep.subr.mxu0 0.0
        %442 = vmatpush1.msra.mxu0 0.0
        %443 = vmatprep.subr.mxu0 0.0
        %444 = vmatpush1.msra.mxu0 0.0
        %445 = vmatprep.subr.mxu0 0.0
        %446 = vmatpush1.msra.mxu0 0.0
        %447 = vmatprep.subr.mxu0 0.0
        %448 = vmatpush1.msra.mxu0 0.0
        %449 = vmatprep.subr.mxu0 0.0
        %450 = vmatpush1.msra.mxu0 0.0
        %451 = vmatprep.subr.mxu0 0.0
        %452 = vmatpush1.msra.mxu0 0.0
        %453 = vmatprep.subr.mxu0 0.0
        %454 = vmatpush1.msra.mxu0 0.0
        %455 = vmatprep.subr.mxu0 0.0
        %456 = vmatpush1.msra.mxu0 0.0
        %457 = vmatprep.subr.mxu0 0.0
        %458 = vmatpush1.msra.mxu0 0.0
        %459 = vmatprep.subr.mxu0 0.0
        %460 = vmatpush1.msra.mxu0 0.0
        %461 = vmatprep.subr.mxu0 0.0
        %462 = vmatpush1.msra.mxu0 0.0
        %463 = vmatprep.subr.mxu0 0.0
        %464 = vmatpush1.msra.mxu0 0.0
        %465 = vmatprep.subr.mxu0 0.0
        %466 = vmatpush1.msra.mxu0 0.0
        %467 = vmatprep.subr.mxu0 0.0
        %468 = vmatpush1.msra.mxu0 0.0
        %469 = vmatprep.subr.mxu0 0.0
        %470 = vmatpush1.msra.mxu0 0.0
        %471 = vmatprep.subr.mxu0 0.0
        %472 = vmatpush1.msra.mxu0 0.0
        %473 = vmatprep.subr.mxu0 0.0
        %474 = vmatpush1.msra.mxu0 0.0
        %475 = vmatprep.subr.mxu0 0.0
        %476 = vmatpush1.msra.mxu0 0.0
        %477 = vmatprep.subr.mxu0 0.0
        %478 = vmatpush1.msra.mxu0 0.0
        %479 = vmatprep.subr.mxu0 0.0
        %480 = vmatpush1.msra.mxu0 0.0
        %481 = vmatprep.subr.mxu0 0.0
        %482 = vmatpush1.msra.mxu0 0.0
        %483 = vmatprep.subr.mxu0 0.0
        %484 = vmatpush1.msra.mxu0 0.0
        %485 = vmatprep.subr.mxu0 0.0
        %486 = vmatpush1.msra.mxu0 0.0
        %487 = vmatprep.subr.mxu0 0.0
        %488 = vmatpush1.msra.mxu0 0.0
        %489 = vmatprep.subr.mxu0 0.0
        %490 = vmatpush1.msra.mxu0 0.0
        %491 = vmatprep.subr.mxu0 0.0
        %492 = vmatpush1.msra.mxu0 0.0
        %493 = vmatprep.mubr.f32.mxu0 0.0
        %494 = vmatmul.mubr.f32.gmra.mrb[0].mxu0 %v418
        %v495 = vpop.f32.mrb[0].mxu0
        %v496 = vadd.f32 %v399, %v495
        %v497 = vpop.f32.mrb[0].mxu0
        %498 = vmatprep.mubr.f32.mxu0 0.0
        %499 = vmatmul.mubr.f32.gmra.mrb[0].mxu0 %v421
        %v500 = vpop.f32.mrb[0].mxu0
        %v501 = vadd.f32 %v404, %v500
        %v502 = vpop.f32.mrb[0].mxu0
        %503 = vmatprep.mubr.f32.mxu0 0.0
        %504 = vmatmul.mubr.f32.gmra.mrb[0].mxu0 %v424
        %v505 = vpop.f32.mrb[0].mxu0
        %v506 = vadd.f32 %v409, %v505
        %v507 = vpop.f32.mrb[0].mxu0
        %508 = vmatprep.mubr.f32.mxu0 0.0
        %509 = vmatmul.mubr.f32.gmra.mrb[0].mxu0 %v427
        %v510 = vpop.f32.mrb[0].mxu0
        %v511 = vadd.f32 %v414, %v510
        %v512 = vpop.f32.mrb[0].mxu0
        %513 = vdwg.mxu0
        %v514 = vmax.f32 %v496, 0.0
        %v515 = vmax.f32 %v501, 0.0
        %v516 = vmax.f32 %v506, 0.0
        %v517 = vmax.f32 %v511, 0.0
        %v518 = vld [vmem:[%s3] sm:$0xff]
        %v519 = vld [vmem:[%s3 + $0x8] sm:$0xff]
        %v520 = vld [vmem:[%s3 + $0x10] sm:$0xff]
        %v521 = vld [vmem:[%s3 + $0x18] sm:$0xff]
        %v522 = vld [vmem:[%s4] sm:$0xff]
        %v523 = vld [vmem:[%s4 + $0x8] sm:$0xff]
        %v524 = vld [vmem:[%s4 + $0x10] sm:$0xff]
        %v525 = vld [vmem:[%s4 + $0x18] sm:$0xff]
        %527 = vset.pattern.permute.xlu0 0
        %528 = vperm.xlu0 %527, %v522
        %v529 = vpop.permute.xlu0 %528
        %532 = vset.pattern.permute.xlu0 0
        %533 = vperm.xlu0 %532, %v523
        %v534 = vpop.permute.xlu0 %533
        %537 = vset.pattern.permute.xlu0 0
        %538 = vperm.xlu0 %537, %v524
        %v539 = vpop.permute.xlu0 %538
        %542 = vset.pattern.permute.xlu0 0
        %543 = vperm.xlu0 %542, %v525
        %v544 = vpop.permute.xlu0 %543
        %vm546 = vcmask 261120
        %v548 = vsel %vm546, %v518, 0
        %v551 = vsel %vm546, %v519, 0
        %v554 = vsel %vm546, %v520, 0
        %v557 = vsel %vm546, %v521, 0
        %559 = vmatprep.subr.mxu0 0.0
        %560 = vmatpush1.msra.mxu0 %v514
        %561 = vmatprep.subr.mxu0 0.0
        %562 = vmatpush1.msra.mxu0 %v515
        %563 = vmatprep.subr.mxu0 0.0
        %564 = vmatpush1.msra.mxu0 %v516
        %565 = vmatprep.subr.mxu0 0.0
        %566 = vmatpush1.msra.mxu0 %v517
        %567 = vmatprep.subr.mxu0 0.0
        %568 = vmatpush1.msra.mxu0 0.0
        %569 = vmatprep.subr.mxu0 0.0
        %570 = vmatpush1.msra.mxu0 0.0
        %571 = vmatprep.subr.mxu0 0.0
        %572 = vmatpush1.msra.mxu0 0.0
        %573 = vmatprep.subr.mxu0 0.0
        %574 = vmatpush1.msra.mxu0 0.0
        %575 = vmatprep.subr.mxu0 0.0
        %576 = vmatpush1.msra.mxu0 0.0
        %577 = vmatprep.subr.mxu0 0.0
        %578 = vmatpush1.msra.mxu0 0.0
        %579 = vmatprep.subr.mxu0 0.0
        %580 = vmatpush1.msra.mxu0 0.0
        %581 = vmatprep.subr.mxu0 0.0
        %582 = vmatpush1.msra.mxu0 0.0
        %583 = vmatprep.subr.mxu0 0.0
        %584 = vmatpush1.msra.mxu0 0.0
        %585 = vmatprep.subr.mxu0 0.0
        %586 = vmatpush1.msra.mxu0 0.0
        %587 = vmatprep.subr.mxu0 0.0
        %588 = vmatpush1.msra.mxu0 0.0
        %589 = vmatprep.subr.mxu0 0.0
        %590 = vmatpush1.msra.mxu0 0.0
        %591 = vmatprep.subr.mxu0 0.0
        %592 = vmatpush1.msra.mxu0 0.0
        %593 = vmatprep.subr.mxu0 0.0
        %594 = vmatpush1.msra.mxu0 0.0
        %595 = vmatprep.subr.mxu0 0.0
        %596 = vmatpush1.msra.mxu0 0.0
        %597 = vmatprep.subr.mxu0 0.0
        %598 = vmatpush1.msra.mxu0 0.0
        %599 = vmatprep.subr.mxu0 0.0
        %600 = vmatpush1.msra.mxu0 0.0
        %601 = vmatprep.subr.mxu0 0.0
        %602 = vmatpush1.msra.mxu0 0.0
        %603 = vmatprep.subr.mxu0 0.0
        %604 = vmatpush1.msra.mxu0 0.0
        %605 = vmatprep.subr.mxu0 0.0
        %606 = vmatpush1.msra.mxu0 0.0
        %607 = vmatprep.subr.mxu0 0.0
        %608 = vmatpush1.msra.mxu0 0.0
        %609 = vmatprep.subr.mxu0 0.0
        %610 = vmatpush1.msra.mxu0 0.0
        %611 = vmatprep.subr.mxu0 0.0
        %612 = vmatpush1.msra.mxu0 0.0
        %613 = vmatprep.subr.mxu0 0.0
        %614 = vmatpush1.msra.mxu0 0.0
        %615 = vmatprep.subr.mxu0 0.0
        %616 = vmatpush1.msra.mxu0 0.0
        %617 = vmatprep.subr.mxu0 0.0
        %618 = vmatpush1.msra.mxu0 0.0
        %619 = vmatprep.subr.mxu0 0.0
        %620 = vmatpush1.msra.mxu0 0.0
        %621 = vmatprep.subr.mxu0 0.0
        %622 = vmatpush1.msra.mxu0 0.0
        %623 = vmatprep.mubr.f32.mxu0 0.0
        %624 = vmatmul.mubr.f32.gmra.mrb[0].mxu0 %v548
        %v625 = vpop.f32.mrb[0].mxu0
        %v626 = vadd.f32 %v529, %v625
        %v627 = vpop.f32.mrb[0].mxu0
        %628 = vmatprep.mubr.f32.mxu0 0.0
        %629 = vmatmul.mubr.f32.gmra.mrb[0].mxu0 %v551
        %v630 = vpop.f32.mrb[0].mxu0
        %v631 = vadd.f32 %v534, %v630
        %v632 = vpop.f32.mrb[0].mxu0
        %633 = vmatprep.mubr.f32.mxu0 0.0
        %634 = vmatmul.mubr.f32.gmra.mrb[0].mxu0 %v554
        %v635 = vpop.f32.mrb[0].mxu0
        %v636 = vadd.f32 %v539, %v635
        %v637 = vpop.f32.mrb[0].mxu0
        %638 = vmatprep.mubr.f32.mxu0 0.0
        %639 = vmatmul.mubr.f32.gmra.mrb[0].mxu0 %v557
        %v640 = vpop.f32.mrb[0].mxu0
        %v641 = vadd.f32 %v544, %v640
        %v642 = vpop.f32.mrb[0].mxu0
        %643 = vdwg.mxu0
        %v644 = vmax.f32 %v626, 0.0
        %v645 = vmax.f32 %v631, 0.0
        %v646 = vmax.f32 %v636, 0.0
        %v647 = vmax.f32 %v641, 0.0
        %v648 = vld [vmem:[%s5] sm:$0xff]
        %v649 = vld [vmem:[%s6] sm:$0xff]
        %651 = vset.pattern.permute.xlu0 0
        %652 = vperm.xlu0 %651, %v649
        %v653 = vpop.permute.xlu0 %652
        %v656 = vsel %vm546, %v648, 0
        %658 = vmatprep.subr.mxu0 0.0
        %659 = vmatpush1.msra.mxu0 %v644
        %660 = vmatprep.subr.mxu0 0.0
        %661 = vmatpush1.msra.mxu0 %v645
        %662 = vmatprep.subr.mxu0 0.0
        %663 = vmatpush1.msra.mxu0 %v646
        %664 = vmatprep.subr.mxu0 0.0
        %665 = vmatpush1.msra.mxu0 %v647
        %666 = vmatprep.subr.mxu0 0.0
        %667 = vmatpush1.msra.mxu0 0.0
        %668 = vmatprep.subr.mxu0 0.0
        %669 = vmatpush1.msra.mxu0 0.0
        %670 = vmatprep.subr.mxu0 0.0
        %671 = vmatpush1.msra.mxu0 0.0
        %672 = vmatprep.subr.mxu0 0.0
        %673 = vmatpush1.msra.mxu0 0.0
        %674 = vmatprep.subr.mxu0 0.0
        %675 = vmatpush1.msra.mxu0 0.0
        %676 = vmatprep.subr.mxu0 0.0
        %677 = vmatpush1.msra.mxu0 0.0
        %678 = vmatprep.subr.mxu0 0.0
        %679 = vmatpush1.msra.mxu0 0.0
        %680 = vmatprep.subr.mxu0 0.0
        %681 = vmatpush1.msra.mxu0 0.0
        %682 = vmatprep.subr.mxu0 0.0
        %683 = vmatpush1.msra.mxu0 0.0
        %684 = vmatprep.subr.mxu0 0.0
        %685 = vmatpush1.msra.mxu0 0.0
        %686 = vmatprep.subr.mxu0 0.0
        %687 = vmatpush1.msra.mxu0 0.0
        %688 = vmatprep.subr.mxu0 0.0
        %689 = vmatpush1.msra.mxu0 0.0
        %690 = vmatprep.subr.mxu0 0.0
        %691 = vmatpush1.msra.mxu0 0.0
        %692 = vmatprep.subr.mxu0 0.0
        %693 = vmatpush1.msra.mxu0 0.0
        %694 = vmatprep.subr.mxu0 0.0
        %695 = vmatpush1.msra.mxu0 0.0
        %696 = vmatprep.subr.mxu0 0.0
        %697 = vmatpush1.msra.mxu0 0.0
        %698 = vmatprep.subr.mxu0 0.0
        %699 = vmatpush1.msra.mxu0 0.0
        %700 = vmatprep.subr.mxu0 0.0
        %701 = vmatpush1.msra.mxu0 0.0
        %702 = vmatprep.subr.mxu0 0.0
        %703 = vmatpush1.msra.mxu0 0.0
        %704 = vmatprep.subr.mxu0 0.0
        %705 = vmatpush1.msra.mxu0 0.0
        %706 = vmatprep.subr.mxu0 0.0
        %707 = vmatpush1.msra.mxu0 0.0
        %708 = vmatprep.subr.mxu0 0.0
        %709 = vmatpush1.msra.mxu0 0.0
        %710 = vmatprep.subr.mxu0 0.0
        %711 = vmatpush1.msra.mxu0 0.0
        %712 = vmatprep.subr.mxu0 0.0
        %713 = vmatpush1.msra.mxu0 0.0
        %714 = vmatprep.subr.mxu0 0.0
        %715 = vmatpush1.msra.mxu0 0.0
        %716 = vmatprep.subr.mxu0 0.0
        %717 = vmatpush1.msra.mxu0 0.0
        %718 = vmatprep.subr.mxu0 0.0
        %719 = vmatpush1.msra.mxu0 0.0
        %720 = vmatprep.subr.mxu0 0.0
        %721 = vmatpush1.msra.mxu0 0.0
        %722 = vmatprep.mubr.f32.mxu0 0.0
        %723 = vmatmul.mubr.f32.gmra.mrb[0].mxu0 %v656
        %v724 = vpop.f32.mrb[0].mxu0
        %v725 = vadd.f32 %v653, %v724
        %v726 = vpop.f32.mrb[0].mxu0
        %727 = vdwg.mxu0
        %v728 = vxor.u32 %v725, 2147483648
        %v729 = vmul.f32 %v728, 1.442695
        %v730 = vpow.pop %v729
        %v731 = vadd.f32 %v730, 1.0
        %v732 = vrcp.pop %v731
        %v733 = vmul.f32 1.0, %v732
        %v734 = vmul.f32 %v733, 2.0
        %v735 = vadd.f32 %v734, -1.0
        %v736 = vld [vmem:[%s7] sm:$0xff]
        %v737 = vld [vmem:[%s385] sm:$0xff]
        %739 = vset.pattern.permute.xlu0 0
        %740 = vperm.xlu0 %739, %v736
        %v741 = vpop.permute.xlu0 %740
        %v743 = vmul.f32 %v741, %v737
        %v744 = vadd.f32 %v735, %v743
        %v745 = vmax.f32 %v744, -1.0
        %v746 = vmin.f32 %v745, 1.0
        %747 = vst [vmem:[%s381] sm:$0xff] %v746
        %s748 = sand.u32 %s230, 1
        %s749 = scalar_lea.sflag [#allocation4], %s748
        %s750 = sand.u32 %s230, 1
        %s751 = smul.addr %s750, 8
        %s752 = scalar_lea.vmem [#allocation3], %s751
        // Predicated region
        $region95: #{tpu_custom_call.1} parent=89 // pred_check
          %p753 = pneg %p240
        $region96: #{tpu_custom_call.1} parent=89 // pred_check_branch
          %755 = sbr.rel (%p753) target = $region98
        $region97: #{tpu_custom_call.1} parent=89 // pred_region
          %s757 = ssub.s32 128, 128
          %758 = vsyncadd %s749, %s757
          %s759 = smul.addr %s23, 128
          %s760 = scalar_lea.hbm %s9, %s759
          %s762 = sshll.u32 %s752, 4
          %s763 = int_to_ptr.vmem [resolvable:$true] %s762
          %765 = dma.vmem_to_hbm [thread:$0]  %s763, 128, %s760, %s749
        $region98: #{tpu_custom_call.1} parent=89 // pred_fallthru
          _
      $region90: #{tpu_custom_call.1} parent=5 // pred_fallthru
        _
      %p766 = scmp.le.s32.totalorder 2, %s18
      // Predicated region
      $region99: #{tpu_custom_call.1} parent=5 // pred_check
        %p767 = pneg %p766
      $region100: #{tpu_custom_call.1} parent=5 // pred_check_branch
        %769 = sbr.rel (%p767) target = $region102
      $region101: #{tpu_custom_call.1} parent=5 // pred_region
        %s770 = ssub.s32 %s18, 2
        // Predicated region
        $region103: #{tpu_custom_call.1} parent=101 // pred_check
          %p771 = pneg %p246
        $region104: #{tpu_custom_call.1} parent=101 // pred_check_branch
          %773 = sbr.rel (%p771) target = $region106
        $region105: #{tpu_custom_call.1} parent=101 // pred_region
          %s774 = sand.u32 %s231, 1
          %s775 = scalar_lea.sflag [#allocation4], %s774
          %s776 = sand.u32 %s231, 1
          %s777 = smul.addr %s776, 8
          %s778 = scalar_lea.vmem [#allocation3], %s777
          %779 = dma.done %s775, 128
        $region106: #{tpu_custom_call.1} parent=101 // pred_fallthru
          _
      $region102: #{tpu_custom_call.1} parent=5 // pred_fallthru
        _
    $region6: #{tpu_custom_call.1} parent=1 // loop_footer
      %s22 = sadd.s32 1, %s18
    $region7: #{tpu_custom_call.1} parent=1 // loop_footer_branch
      %17 = sbr.rel target = $region3
    $region8: #{tpu_custom_call.1} parent=1 // loop_exit
      _
    %780 = vsyncpa [#allocation4], 1
    %s781 = scalar_lea.sflag [#allocation4], 1
    %782 = vsyncpa %s781, 1

</llo_original>
